<compile_context>
chip_gen: v5e
topology: v5e:2x2
jax: 0.10.0
libtpu: 0.0.40
codegen_flags: <defaults>
</compile_context>

<pallas_src>
import functools

import jax
import jax.numpy as jnp
from jax.experimental import pallas as pl
from jax.experimental.pallas import tpu as pltpu


# -----------------------------------------------------------------------------
# Kernel
# -----------------------------------------------------------------------------
def _ae_kernel(x_ref,
               w1_ref, b1_ref, w2_ref, b2_ref, w3_ref, b3_ref,
               w4_ref, b4_ref, w5_ref, b5_ref, w6_ref, b6_ref,
               o_ref):
    """Whole-network forward for one (lane-packed) batch tile.

    bf16 operands on the MXU with f32 accumulation; bias / ReLU / sigmoid on
    the f32 accumulator; inter-layer activations stored as bf16.
    """

    def dense(h, w_ref, b_ref):
        y = jnp.dot(h, w_ref[...], preferred_element_type=jnp.float32)
        return y + b_ref[...]

    def relu_bf16(y):
        # ReLU on the f32 accumulator, stored back in bf16 to halve the
        # vreg/VMEM traffic of the (tile_rows x 256) intermediates.
        return jnp.maximum(y, 0.0).astype(jnp.bfloat16)

    h = x_ref[...].astype(jnp.bfloat16)

    # encoder
    h = relu_bf16(dense(h, w1_ref, b1_ref))
    h = relu_bf16(dense(h, w2_ref, b2_ref))
    h = relu_bf16(dense(h, w3_ref, b3_ref))
    # decoder
    h = relu_bf16(dense(h, w4_ref, b4_ref))
    h = relu_bf16(dense(h, w5_ref, b5_ref))
    y = dense(h, w6_ref, b6_ref)

    # sigmoid(x) == 0.5 * tanh(0.5 x) + 0.5  (single EUP transcendental)
    y = 0.5 * jnp.tanh(0.5 * y) + 0.5
    o_ref[...] = y.astype(o_ref.dtype)


# -----------------------------------------------------------------------------
# Parameter preparation (done once, outside jit)
# -----------------------------------------------------------------------------
def lane_pack_factor(input_dim):
    """How many samples fit in one 128-lane row."""
    if input_dim <= 128 and 128 % input_dim == 0:
        return 128 // input_dim
    return 1


def _block_diag(w, pack):
    """Replicate W block-diagonally `pack` times: [pack*in, pack*out]."""
    if pack == 1:
        return w
    fi, fo = w.shape
    out = jnp.zeros((pack * fi, pack * fo), w.dtype)
    for p in range(pack):
        out = out.at[p * fi:(p + 1) * fi, p * fo:(p + 1) * fo].set(w)
    return out


def prepare_params(params, input_dim, weight_dtype=jnp.bfloat16):
    """Pack weights block-diagonally (lane-dense batch packing), cast to bf16.

    Biases are tiled `pack` times and kept in f32 (added to the f32
    accumulator).  Returns (packed_params, pack).
    """
    pack = lane_pack_factor(input_dim)
    packed = []
    for w, b in zip(params[0::2], params[1::2]):
        packed.append(_block_diag(w, pack).astype(weight_dtype))
        packed.append(jnp.tile(b, (1, pack)).astype(jnp.float32))
    return tuple(packed), pack


# -----------------------------------------------------------------------------
# Forward wrapper
# -----------------------------------------------------------------------------
def _round_up(n, m):
    return ((n + m - 1) // m) * m


@functools.partial(jax.jit, static_argnames=("pack", "tile_b", "out_dtype"))
def autoencoder_forward(x, packed_params, *, pack, tile_b=4096,
                        out_dtype=jnp.float32):
    """x: [B, D].  packed_params: output of prepare_params."""
    B, D = x.shape
    lanes = pack * D

    # ---- tile sizing ---------------------------------------------------------
    # Packed row count (pack samples per row).
    Bp = pl.cdiv(B, pack)
    # Largest tile the knob allows ...
    max_rows = max(8, tile_b // pack)
    # ... but keep at least 2 (balanced) grid steps when the batch allows it,
    # so v7x's two TensorCores both get work under "parallel" semantics.
    half = _round_up(pl.cdiv(Bp, 2), 8)
    tile_rows = max(8, min(max_rows, half))
    Bp_pad = _round_up(Bp, tile_rows)
    grid = (Bp_pad // tile_rows,)

    # ---- single pad (skipped when B already matches) + lane packing ----------
    total_rows = Bp_pad * pack
    if total_rows != B:
        x = jnp.pad(x, ((0, total_rows - B), (0, 0)))
    xp = x.reshape(Bp_pad, lanes)

    io_in_spec = pl.BlockSpec((tile_rows, lanes), lambda i: (i, 0))
    io_out_spec = pl.BlockSpec((tile_rows, lanes), lambda i: (i, 0))

    def full_spec(arr):
        # Whole-array block, same block index every grid step -> VMEM resident.
        return pl.BlockSpec(arr.shape, lambda i, _n=arr.ndim: (0,) * _n)

    in_specs = [io_in_spec] + [full_spec(p) for p in packed_params]

    out = pl.pallas_call(
        _ae_kernel,
        out_shape=jax.ShapeDtypeStruct((Bp_pad, lanes), out_dtype),
        grid_spec=pltpu.PrefetchScalarGridSpec(
            num_scalar_prefetch=0,
            grid=grid,
            in_specs=in_specs,
            out_specs=io_out_spec,
        ),
        compiler_params=pltpu.CompilerParams(
            dimension_semantics=("parallel",),
            vmem_limit_bytes=48 * 1024 * 1024,
        ),
    )(xp, *packed_params)

    # ---- unpack back to [B, D] ------------------------------------------------
    return out.reshape(total_rows, D)[:B]


# -----------------------------------------------------------------------------
# Init + reference
# -----------------------------------------------------------------------------
def init_params(input_dim, key):
    """Deterministic Kaiming-uniform-ish init, weights stored [in, out]."""
    dims = [(input_dim, 64), (64, 32), (32, 16),      # encoder
            (16, 32), (32, 64), (64, input_dim)]      # decoder
    params = []
    for (fan_in, fan_out) in dims:
        kw, kb, key = jax.random.split(key, 3)
        bound = 1.0 / jnp.sqrt(fan_in)
        w = jax.random.uniform(kw, (fan_in, fan_out), jnp.float32, -bound, bound)
        b = jax.random.uniform(kb, (1, fan_out), jnp.float32, -bound, bound)
        params += [w, b]
    return tuple(params)


def reference_forward(x, params, weight_dtype=jnp.bfloat16):
    """Plain-JAX reference with the same bf16-operand / f32-accum semantics."""
    ws, bs = params[0::2], params[1::2]
    h = x.astype(jnp.float32)
    n = len(ws)
    for idx, (w, b) in enumerate(zip(ws, bs)):
        y = jnp.dot(h.astype(weight_dtype), w.astype(weight_dtype),
                    preferred_element_type=jnp.float32) + b
        h = jax.nn.sigmoid(y) if idx == n - 1 else jnp.maximum(y, 0.0)
    return h


# -----------------------------------------------------------------------------
# Demo / self-test
# -----------------------------------------------------------------------------
if __name__ == "__main__":
    input_dim = 32      # corresponds to normal_data.shape[1]

    key = jax.random.PRNGKey(0)
    kx, kp = jax.random.split(key)
    params = init_params(input_dim, kp)
    packed_params, pack = prepare_params(params, input_dim)

    # batch=256 exercises two balanced grid steps (megacore); batch=250
    # exercises non-multiple padding / unpadding.
    for batch in (256, 250):
        kx, sub = jax.random.split(kx)
        x = jax.random.uniform(sub, (batch, input_dim), jnp.float32)

        out = autoencoder_forward(x, packed_params, pack=pack)
        out = jax.block_until_ready(out)

        ref = reference_forward(x, params)
        assert out.shape == (batch, input_dim)
        assert bool(jnp.allclose(out, ref, atol=2e-3, rtol=2e-3)), \
            f"mismatch vs reference at batch={batch}"

    print("KERNEL_OK")
</pallas_src>

<mosaic_0001>
module attributes {stable_mosaic.version = 11 : i64} {
  func.func @_ae_kernel(%arg0: i32, %arg1: memref<32x128xf32, #tpu.memory_space<vmem>>, %arg2: memref<128x256xbf16, #tpu.memory_space<vmem>>, %arg3: memref<1x256xf32, #tpu.memory_space<vmem>>, %arg4: memref<256x128xbf16, #tpu.memory_space<vmem>>, %arg5: memref<1x128xf32, #tpu.memory_space<vmem>>, %arg6: memref<128x64xbf16, #tpu.memory_space<vmem>>, %arg7: memref<1x64xf32, #tpu.memory_space<vmem>>, %arg8: memref<64x128xbf16, #tpu.memory_space<vmem>>, %arg9: memref<1x128xf32, #tpu.memory_space<vmem>>, %arg10: memref<128x256xbf16, #tpu.memory_space<vmem>>, %arg11: memref<1x256xf32, #tpu.memory_space<vmem>>, %arg12: memref<256x128xbf16, #tpu.memory_space<vmem>>, %arg13: memref<1x128xf32, #tpu.memory_space<vmem>>, %arg14: memref<32x128xf32, #tpu.memory_space<vmem>>) attributes {dimension_semantics = [#tpu.dimension_semantics<parallel>], iteration_bounds = array<i64: 2>, scalar_prefetch = 0 : i64, scratch_operands = 0 : i64, tpu.core_type = #tpu.core_type<tc>, window_params = [{transform_indices = @transform_0, window_bounds = array<i64: 32, 128>}, {pipeline_mode = #tpu.pipeline_mode<synchronous>, transform_indices = @transform_1, window_bounds = array<i64: 128, 256>}, {pipeline_mode = #tpu.pipeline_mode<synchronous>, transform_indices = @transform_2, window_bounds = array<i64: 1, 256>}, {pipeline_mode = #tpu.pipeline_mode<synchronous>, transform_indices = @transform_3, window_bounds = array<i64: 256, 128>}, {pipeline_mode = #tpu.pipeline_mode<synchronous>, transform_indices = @transform_4, window_bounds = array<i64: 1, 128>}, {pipeline_mode = #tpu.pipeline_mode<synchronous>, transform_indices = @transform_5, window_bounds = array<i64: 128, 64>}, {pipeline_mode = #tpu.pipeline_mode<synchronous>, transform_indices = @transform_6, window_bounds = array<i64: 1, 64>}, {pipeline_mode = #tpu.pipeline_mode<synchronous>, transform_indices = @transform_7, window_bounds = array<i64: 64, 128>}, {pipeline_mode = #tpu.pipeline_mode<synchronous>, transform_indices = @transform_8, window_bounds = array<i64: 1, 128>}, {pipeline_mode = #tpu.pipeline_mode<synchronous>, transform_indices = @transform_9, window_bounds = array<i64: 128, 256>}, {pipeline_mode = #tpu.pipeline_mode<synchronous>, transform_indices = @transform_10, window_bounds = array<i64: 1, 256>}, {pipeline_mode = #tpu.pipeline_mode<synchronous>, transform_indices = @transform_11, window_bounds = array<i64: 256, 128>}, {pipeline_mode = #tpu.pipeline_mode<synchronous>, transform_indices = @transform_12, window_bounds = array<i64: 1, 128>}, {transform_indices = @transform_13, window_bounds = array<i64: 32, 128>}]} {
    %c0 = arith.constant 0 : index
    %c0_0 = arith.constant 0 : index
    %0 = vector.load %arg1[%c0, %c0_0] : memref<32x128xf32, #tpu.memory_space<vmem>>, vector<32x128xf32>
    %1 = arith.truncf %0 : vector<32x128xf32> to vector<32x128xbf16>
    %c0_1 = arith.constant 0 : index
    %c0_2 = arith.constant 0 : index
    %2 = vector.load %arg2[%c0_1, %c0_2] : memref<128x256xbf16, #tpu.memory_space<vmem>>, vector<128x256xbf16>
    %cst = arith.constant dense<0.000000e+00> : vector<32x256xf32>
    %3 = tpu.matmul %1, %2, %cst {dimension_numbers = #tpu.dot_dimension_numbers<[1], [0], [0], [1], [0, 0, 1, 1], [], []>} : vector<32x128xbf16>, vector<128x256xbf16>, vector<32x256xf32> -> vector<32x256xf32>
    %c0_3 = arith.constant 0 : index
    %c0_4 = arith.constant 0 : index
    %4 = vector.load %arg3[%c0_3, %c0_4] : memref<1x256xf32, #tpu.memory_space<vmem>>, vector<1x256xf32>
    %5 = vector.broadcast %4 : vector<1x256xf32> to vector<32x256xf32>
    %6 = arith.addf %3, %5 : vector<32x256xf32>
    %cst_5 = arith.constant 0.000000e+00 : f32
    %7 = vector.broadcast %cst_5 : f32 to vector<32x256xf32>
    %8 = arith.maximumf %6, %7 : vector<32x256xf32>
    %9 = arith.truncf %8 : vector<32x256xf32> to vector<32x256xbf16>
    %c0_6 = arith.constant 0 : index
    %c0_7 = arith.constant 0 : index
    %10 = vector.load %arg4[%c0_6, %c0_7] : memref<256x128xbf16, #tpu.memory_space<vmem>>, vector<256x128xbf16>
    %cst_8 = arith.constant dense<0.000000e+00> : vector<32x128xf32>
    %11 = tpu.matmul %9, %10, %cst_8 {dimension_numbers = #tpu.dot_dimension_numbers<[1], [0], [0], [1], [0, 0, 1, 1], [], []>} : vector<32x256xbf16>, vector<256x128xbf16>, vector<32x128xf32> -> vector<32x128xf32>
    %c0_9 = arith.constant 0 : index
    %c0_10 = arith.constant 0 : index
    %12 = vector.load %arg5[%c0_9, %c0_10] : memref<1x128xf32, #tpu.memory_space<vmem>>, vector<1x128xf32>
    %13 = vector.broadcast %12 : vector<1x128xf32> to vector<32x128xf32>
    %14 = arith.addf %11, %13 : vector<32x128xf32>
    %cst_11 = arith.constant 0.000000e+00 : f32
    %15 = vector.broadcast %cst_11 : f32 to vector<32x128xf32>
    %16 = arith.maximumf %14, %15 : vector<32x128xf32>
    %17 = arith.truncf %16 : vector<32x128xf32> to vector<32x128xbf16>
    %c0_12 = arith.constant 0 : index
    %c0_13 = arith.constant 0 : index
    %18 = vector.load %arg6[%c0_12, %c0_13] : memref<128x64xbf16, #tpu.memory_space<vmem>>, vector<128x64xbf16>
    %cst_14 = arith.constant dense<0.000000e+00> : vector<32x64xf32>
    %19 = tpu.matmul %17, %18, %cst_14 {dimension_numbers = #tpu.dot_dimension_numbers<[1], [0], [0], [1], [0, 0, 1, 1], [], []>} : vector<32x128xbf16>, vector<128x64xbf16>, vector<32x64xf32> -> vector<32x64xf32>
    %c0_15 = arith.constant 0 : index
    %c0_16 = arith.constant 0 : index
    %20 = vector.load %arg7[%c0_15, %c0_16] : memref<1x64xf32, #tpu.memory_space<vmem>>, vector<1x64xf32>
    %21 = vector.broadcast %20 : vector<1x64xf32> to vector<32x64xf32>
    %22 = arith.addf %19, %21 : vector<32x64xf32>
    %cst_17 = arith.constant 0.000000e+00 : f32
    %23 = vector.broadcast %cst_17 : f32 to vector<32x64xf32>
    %24 = arith.maximumf %22, %23 : vector<32x64xf32>
    %25 = arith.truncf %24 : vector<32x64xf32> to vector<32x64xbf16>
    %c0_18 = arith.constant 0 : index
    %c0_19 = arith.constant 0 : index
    %26 = vector.load %arg8[%c0_18, %c0_19] : memref<64x128xbf16, #tpu.memory_space<vmem>>, vector<64x128xbf16>
    %cst_20 = arith.constant dense<0.000000e+00> : vector<32x128xf32>
    %27 = tpu.matmul %25, %26, %cst_20 {dimension_numbers = #tpu.dot_dimension_numbers<[1], [0], [0], [1], [0, 0, 1, 1], [], []>} : vector<32x64xbf16>, vector<64x128xbf16>, vector<32x128xf32> -> vector<32x128xf32>
    %c0_21 = arith.constant 0 : index
    %c0_22 = arith.constant 0 : index
    %28 = vector.load %arg9[%c0_21, %c0_22] : memref<1x128xf32, #tpu.memory_space<vmem>>, vector<1x128xf32>
    %29 = vector.broadcast %28 : vector<1x128xf32> to vector<32x128xf32>
    %30 = arith.addf %27, %29 : vector<32x128xf32>
    %cst_23 = arith.constant 0.000000e+00 : f32
    %31 = vector.broadcast %cst_23 : f32 to vector<32x128xf32>
    %32 = arith.maximumf %30, %31 : vector<32x128xf32>
    %33 = arith.truncf %32 : vector<32x128xf32> to vector<32x128xbf16>
    %c0_24 = arith.constant 0 : index
    %c0_25 = arith.constant 0 : index
    %34 = vector.load %arg10[%c0_24, %c0_25] : memref<128x256xbf16, #tpu.memory_space<vmem>>, vector<128x256xbf16>
    %cst_26 = arith.constant dense<0.000000e+00> : vector<32x256xf32>
    %35 = tpu.matmul %33, %34, %cst_26 {dimension_numbers = #tpu.dot_dimension_numbers<[1], [0], [0], [1], [0, 0, 1, 1], [], []>} : vector<32x128xbf16>, vector<128x256xbf16>, vector<32x256xf32> -> vector<32x256xf32>
    %c0_27 = arith.constant 0 : index
    %c0_28 = arith.constant 0 : index
    %36 = vector.load %arg11[%c0_27, %c0_28] : memref<1x256xf32, #tpu.memory_space<vmem>>, vector<1x256xf32>
    %37 = vector.broadcast %36 : vector<1x256xf32> to vector<32x256xf32>
    %38 = arith.addf %35, %37 : vector<32x256xf32>
    %cst_29 = arith.constant 0.000000e+00 : f32
    %39 = vector.broadcast %cst_29 : f32 to vector<32x256xf32>
    %40 = arith.maximumf %38, %39 : vector<32x256xf32>
    %41 = arith.truncf %40 : vector<32x256xf32> to vector<32x256xbf16>
    %c0_30 = arith.constant 0 : index
    %c0_31 = arith.constant 0 : index
    %42 = vector.load %arg12[%c0_30, %c0_31] : memref<256x128xbf16, #tpu.memory_space<vmem>>, vector<256x128xbf16>
    %cst_32 = arith.constant dense<0.000000e+00> : vector<32x128xf32>
    %43 = tpu.matmul %41, %42, %cst_32 {dimension_numbers = #tpu.dot_dimension_numbers<[1], [0], [0], [1], [0, 0, 1, 1], [], []>} : vector<32x256xbf16>, vector<256x128xbf16>, vector<32x128xf32> -> vector<32x128xf32>
    %c0_33 = arith.constant 0 : index
    %c0_34 = arith.constant 0 : index
    %44 = vector.load %arg13[%c0_33, %c0_34] : memref<1x128xf32, #tpu.memory_space<vmem>>, vector<1x128xf32>
    %45 = vector.broadcast %44 : vector<1x128xf32> to vector<32x128xf32>
    %46 = arith.addf %43, %45 : vector<32x128xf32>
    %cst_35 = arith.constant 5.000000e-01 : f32
    %47 = vector.broadcast %cst_35 : f32 to vector<32x128xf32>
    %48 = arith.mulf %47, %46 : vector<32x128xf32>
    %49 = math.tanh %48 : vector<32x128xf32>
    %cst_36 = arith.constant 5.000000e-01 : f32
    %50 = vector.broadcast %cst_36 : f32 to vector<32x128xf32>
    %51 = arith.mulf %50, %49 : vector<32x128xf32>
    %cst_37 = arith.constant 5.000000e-01 : f32
    %52 = vector.broadcast %cst_37 : f32 to vector<32x128xf32>
    %53 = arith.addf %51, %52 : vector<32x128xf32>
    %c0_38 = arith.constant 0 : index
    %c0_39 = arith.constant 0 : index
    %54 = vector.load %arg14[%c0_38, %c0_39] : memref<32x128xf32, #tpu.memory_space<vmem>>, vector<32x128xf32>
    tpu.vector_store %arg14[%c0_38, %c0_39], %53 {strides = array<i32>} : memref<32x128xf32, #tpu.memory_space<vmem>>, vector<32x128xf32>,
    return
  }
  func.func @transform_0(%arg0: i32) -> (i32, i32) {
    %c0_i32 = arith.constant 0 : i32
    %c0_i32_0 = arith.constant 0 : i32
    return %arg0, %c0_i32 : i32, i32
  }
  func.func @transform_1(%arg0: i32) -> (i32, i32) {
    %c0_i32 = arith.constant 0 : i32
    %c0_i32_0 = arith.constant 0 : i32
    %c0_i32_1 = arith.constant 0 : i32
    return %c0_i32, %c0_i32_0 : i32, i32
  }
  func.func @transform_2(%arg0: i32) -> (i32, i32) {
    %c0_i32 = arith.constant 0 : i32
    %c0_i32_0 = arith.constant 0 : i32
    %c0_i32_1 = arith.constant 0 : i32
    return %c0_i32, %c0_i32_0 : i32, i32
  }
  func.func @transform_3(%arg0: i32) -> (i32, i32) {
    %c0_i32 = arith.constant 0 : i32
    %c0_i32_0 = arith.constant 0 : i32
    %c0_i32_1 = arith.constant 0 : i32
    return %c0_i32, %c0_i32_0 : i32, i32
  }
  func.func @transform_4(%arg0: i32) -> (i32, i32) {
    %c0_i32 = arith.constant 0 : i32
    %c0_i32_0 = arith.constant 0 : i32
    %c0_i32_1 = arith.constant 0 : i32
    return %c0_i32, %c0_i32_0 : i32, i32
  }
  func.func @transform_5(%arg0: i32) -> (i32, i32) {
    %c0_i32 = arith.constant 0 : i32
    %c0_i32_0 = arith.constant 0 : i32
    %c0_i32_1 = arith.constant 0 : i32
    return %c0_i32, %c0_i32_0 : i32, i32
  }
  func.func @transform_6(%arg0: i32) -> (i32, i32) {
    %c0_i32 = arith.constant 0 : i32
    %c0_i32_0 = arith.constant 0 : i32
    %c0_i32_1 = arith.constant 0 : i32
    return %c0_i32, %c0_i32_0 : i32, i32
  }
  func.func @transform_7(%arg0: i32) -> (i32, i32) {
    %c0_i32 = arith.constant 0 : i32
    %c0_i32_0 = arith.constant 0 : i32
    %c0_i32_1 = arith.constant 0 : i32
    return %c0_i32, %c0_i32_0 : i32, i32
  }
  func.func @transform_8(%arg0: i32) -> (i32, i32) {
    %c0_i32 = arith.constant 0 : i32
    %c0_i32_0 = arith.constant 0 : i32
    %c0_i32_1 = arith.constant 0 : i32
    return %c0_i32, %c0_i32_0 : i32, i32
  }
  func.func @transform_9(%arg0: i32) -> (i32, i32) {
    %c0_i32 = arith.constant 0 : i32
    %c0_i32_0 = arith.constant 0 : i32
    %c0_i32_1 = arith.constant 0 : i32
    return %c0_i32, %c0_i32_0 : i32, i32
  }
  func.func @transform_10(%arg0: i32) -> (i32, i32) {
    %c0_i32 = arith.constant 0 : i32
    %c0_i32_0 = arith.constant 0 : i32
    %c0_i32_1 = arith.constant 0 : i32
    return %c0_i32, %c0_i32_0 : i32, i32
  }
  func.func @transform_11(%arg0: i32) -> (i32, i32) {
    %c0_i32 = arith.constant 0 : i32
    %c0_i32_0 = arith.constant 0 : i32
    %c0_i32_1 = arith.constant 0 : i32
    return %c0_i32, %c0_i32_0 : i32, i32
  }
  func.func @transform_12(%arg0: i32) -> (i32, i32) {
    %c0_i32 = arith.constant 0 : i32
    %c0_i32_0 = arith.constant 0 : i32
    %c0_i32_1 = arith.constant 0 : i32
    return %c0_i32, %c0_i32_0 : i32, i32
  }
  func.func @transform_13(%arg0: i32) -> (i32, i32) {
    %c0_i32 = arith.constant 0 : i32
    %c0_i32_0 = arith.constant 0 : i32
    return %arg0, %c0_i32 : i32, i32
  }
}

</mosaic_0001>

<llo_original>
// kernel: autoencoder_forward.1
$region0: #{autoencoder_forward.1}
  #allocation0 [shape = 'u32[]', space=smem, size = 0x4, offset = 0x4, fixed_abs, tag = 'smem constant byte address 0x4 - core index']
  #allocation1 [shape = 'u32[72,128]{1,0:T(1,128)}', space=vmem, size = 0x9000, scoped, tag = 'internal scratch']
  %s0 = inlined_call_operand.vmem [shape: f32[64,128], index: 0, kind: input, shape index: {}]
  %s1 = inlined_call_operand.vmem [shape: bf16[128,256], index: 1, kind: input, shape index: {}]
  %s2 = inlined_call_operand.vmem [shape: f32[1,256], index: 2, kind: input, shape index: {}]
  %s3 = inlined_call_operand.vmem [shape: bf16[256,128], index: 3, kind: input, shape index: {}]
  %s4 = inlined_call_operand.vmem [shape: f32[1,128], index: 4, kind: input, shape index: {}]
  %s5 = inlined_call_operand.vmem [shape: bf16[128,64], index: 5, kind: input, shape index: {}]
  %s6 = inlined_call_operand.vmem [shape: f32[1,64], index: 6, kind: input, shape index: {}]
  %s7 = inlined_call_operand.vmem [shape: bf16[64,128], index: 7, kind: input, shape index: {}]
  %s8 = inlined_call_operand.vmem [shape: f32[1,128], index: 8, kind: input, shape index: {}]
  %s9 = inlined_call_operand.vmem [shape: bf16[128,256], index: 9, kind: input, shape index: {}]
  %s10 = inlined_call_operand.vmem [shape: f32[1,256], index: 10, kind: input, shape index: {}]
  %s11 = inlined_call_operand.vmem [shape: bf16[256,128], index: 11, kind: input, shape index: {}]
  %s12 = inlined_call_operand.vmem [shape: f32[1,128], index: 12, kind: input, shape index: {}]
  %s13 = inlined_call_operand.vmem [shape: f32[64,128], index: 13, kind: output, shape index: {}]
  %s14 = sld [smem:[#allocation0]]
  $region85: #{autoencoder_forward.1} parent=0
    _
  %s16 = ssub.s32 1, %s14
  %s17 = scalar_select 0, %s16, %s14
  loop: start=0, step=1, limit=4
  $region2: #{autoencoder_forward.1} parent=0 // loop_pre_header
    _
  $region3: #{autoencoder_forward.1} parent=0 // loop_header
    %s19 = sphi 0, %s23
    %p20 = scmp.ge.s32.totalorder %s19, 4
    %s29 = sphi 0, %s31
    %s32 = sphi 0, %s29
    %s33 = sphi 0, %s32
    %s49 = sphi 0, %s33
    %s53 = sphi 0, %s53
    %s55 = sphi 0, %s53
    %s56 = sphi 0, %s55
    %s70 = sphi 0, %s56
    %s74 = sphi 0, %s74
    %s76 = sphi 0, %s74
    %s77 = sphi 0, %s76
    %s91 = sphi 0, %s77
    %s95 = sphi 0, %s95
    %s97 = sphi 0, %s95
    %s98 = sphi 0, %s97
    %s112 = sphi 0, %s98
    %s116 = sphi 0, %s116
    %s118 = sphi 0, %s116
    %s119 = sphi 0, %s118
    %s133 = sphi 0, %s119
    %s137 = sphi 0, %s137
    %s139 = sphi 0, %s137
    %s140 = sphi 0, %s139
    %s154 = sphi 0, %s140
    %s158 = sphi 0, %s158
    %s160 = sphi 0, %s158
    %s161 = sphi 0, %s160
    %s175 = sphi 0, %s161
    %s179 = sphi 0, %s179
    %s181 = sphi 0, %s179
    %s182 = sphi 0, %s181
    %s196 = sphi 0, %s182
    %s200 = sphi 0, %s200
    %s202 = sphi 0, %s200
    %s203 = sphi 0, %s202
    %s217 = sphi 0, %s203
    %s221 = sphi 0, %s221
    %s223 = sphi 0, %s221
    %s224 = sphi 0, %s223
    %s238 = sphi 0, %s224
    %s242 = sphi 0, %s242
    %s244 = sphi 0, %s242
    %s245 = sphi 0, %s244
    %s259 = sphi 0, %s245
    %s263 = sphi 0, %s263
    %s265 = sphi 0, %s263
    %s266 = sphi 0, %s265
    %s280 = sphi 0, %s266
    %s284 = sphi 0, %s284
    %s286 = sphi 0, %s284
    %s287 = sphi 0, %s286
    %s301 = sphi 0, %s287
    %s307 = sphi 0, %s309
    %s310 = sphi 0, %s307
    %s311 = sphi 0, %s310
    %s327 = sphi 0, %s311
  $region4: #{autoencoder_forward.1} parent=0 // loop_header_branch
    %22 = sbr.rel (%p20) target = $region8
  $region5: #{autoencoder_forward.1} parent=0 // loop_body
    %s24 = ssub.s32 %s19, 1
    %s25 = ssub.s32 %s19, 2
    %s26 = sadd.s32 %s19, 1
    %s27 = ssub.s32 %s19, %s26
    %p28 = scmp.eq.s32.totalorder %s27, 0
    %s30 = sadd.s32 %s29, 1
    %s31 = scalar_select %p28, %s29, %s30
    %p34 = pneg %p28
    %p35 = scmp.eq.s32.totalorder %s19, 1
    %p36 = por %p34, %p35
    %p37 = scmp.ne.s32.totalorder %s29, %s32
    %p38 = scmp.eq.s32.totalorder %s19, 0
    %p39 = por %p37, %p38
    %p40 = scmp.ne.s32.totalorder %s29, %s32
    %p41 = scmp.eq.s32.totalorder %s24, 1
    %p42 = por %p40, %p41
    %p43 = scmp.ne.s32.totalorder %s32, %s33
    %p44 = scmp.eq.s32.totalorder %s24, 0
    %p45 = por %p43, %p44
    %p46 = scmp.ne.s32.totalorder %s32, %s33
    %p47 = scmp.eq.s32.totalorder %s25, 1
    %p48 = por %p46, %p47
    %p50 = scmp.ne.s32.totalorder %s33, %s49
    %p51 = scmp.eq.s32.totalorder %s25, 0
    %p52 = por %p50, %p51
    %s54 = sadd.s32 %s53, 1
    %p57 = scmp.eq.s32.totalorder %s19, 1
    %p58 = scmp.ne.s32.totalorder %s53, %s55
    %p59 = scmp.eq.s32.totalorder %s19, 0
    %p60 = por %p58, %p59
    %p61 = scmp.ne.s32.totalorder %s53, %s55
    %p62 = scmp.eq.s32.totalorder %s24, 1
    %p63 = por %p61, %p62
    %p64 = scmp.ne.s32.totalorder %s55, %s56
    %p65 = scmp.eq.s32.totalorder %s24, 0
    %p66 = por %p64, %p65
    %p67 = scmp.ne.s32.totalorder %s55, %s56
    %p68 = scmp.eq.s32.totalorder %s25, 1
    %p69 = por %p67, %p68
    %p71 = scmp.ne.s32.totalorder %s56, %s70
    %p72 = scmp.eq.s32.totalorder %s25, 0
    %p73 = por %p71, %p72
    %s75 = sadd.s32 %s74, 1
    %p78 = scmp.eq.s32.totalorder %s19, 1
    %p79 = scmp.ne.s32.totalorder %s74, %s76
    %p80 = scmp.eq.s32.totalorder %s19, 0
    %p81 = por %p79, %p80
    %p82 = scmp.ne.s32.totalorder %s74, %s76
    %p83 = scmp.eq.s32.totalorder %s24, 1
    %p84 = por %p82, %p83
    %p85 = scmp.ne.s32.totalorder %s76, %s77
    %p86 = scmp.eq.s32.totalorder %s24, 0
    %p87 = por %p85, %p86
    %p88 = scmp.ne.s32.totalorder %s76, %s77
    %p89 = scmp.eq.s32.totalorder %s25, 1
    %p90 = por %p88, %p89
    %p92 = scmp.ne.s32.totalorder %s77, %s91
    %p93 = scmp.eq.s32.totalorder %s25, 0
    %p94 = por %p92, %p93
    %s96 = sadd.s32 %s95, 1
    %p99 = scmp.eq.s32.totalorder %s19, 1
    %p100 = scmp.ne.s32.totalorder %s95, %s97
    %p101 = scmp.eq.s32.totalorder %s19, 0
    %p102 = por %p100, %p101
    %p103 = scmp.ne.s32.totalorder %s95, %s97
    %p104 = scmp.eq.s32.totalorder %s24, 1
    %p105 = por %p103, %p104
    %p106 = scmp.ne.s32.totalorder %s97, %s98
    %p107 = scmp.eq.s32.totalorder %s24, 0
    %p108 = por %p106, %p107
    %p109 = scmp.ne.s32.totalorder %s97, %s98
    %p110 = scmp.eq.s32.totalorder %s25, 1
    %p111 = por %p109, %p110
    %p113 = scmp.ne.s32.totalorder %s98, %s112
    %p114 = scmp.eq.s32.totalorder %s25, 0
    %p115 = por %p113, %p114
    %s117 = sadd.s32 %s116, 1
    %p120 = scmp.eq.s32.totalorder %s19, 1
    %p121 = scmp.ne.s32.totalorder %s116, %s118
    %p122 = scmp.eq.s32.totalorder %s19, 0
    %p123 = por %p121, %p122
    %p124 = scmp.ne.s32.totalorder %s116, %s118
    %p125 = scmp.eq.s32.totalorder %s24, 1
    %p126 = por %p124, %p125
    %p127 = scmp.ne.s32.totalorder %s118, %s119
    %p128 = scmp.eq.s32.totalorder %s24, 0
    %p129 = por %p127, %p128
    %p130 = scmp.ne.s32.totalorder %s118, %s119
    %p131 = scmp.eq.s32.totalorder %s25, 1
    %p132 = por %p130, %p131
    %p134 = scmp.ne.s32.totalorder %s119, %s133
    %p135 = scmp.eq.s32.totalorder %s25, 0
    %p136 = por %p134, %p135
    %s138 = sadd.s32 %s137, 1
    %p141 = scmp.eq.s32.totalorder %s19, 1
    %p142 = scmp.ne.s32.totalorder %s137, %s139
    %p143 = scmp.eq.s32.totalorder %s19, 0
    %p144 = por %p142, %p143
    %p145 = scmp.ne.s32.totalorder %s137, %s139
    %p146 = scmp.eq.s32.totalorder %s24, 1
    %p147 = por %p145, %p146
    %p148 = scmp.ne.s32.totalorder %s139, %s140
    %p149 = scmp.eq.s32.totalorder %s24, 0
    %p150 = por %p148, %p149
    %p151 = scmp.ne.s32.totalorder %s139, %s140
    %p152 = scmp.eq.s32.totalorder %s25, 1
    %p153 = por %p151, %p152
    %p155 = scmp.ne.s32.totalorder %s140, %s154
    %p156 = scmp.eq.s32.totalorder %s25, 0
    %p157 = por %p155, %p156
    %s159 = sadd.s32 %s158, 1
    %p162 = scmp.eq.s32.totalorder %s19, 1
    %p163 = scmp.ne.s32.totalorder %s158, %s160
    %p164 = scmp.eq.s32.totalorder %s19, 0
    %p165 = por %p163, %p164
    %p166 = scmp.ne.s32.totalorder %s158, %s160
    %p167 = scmp.eq.s32.totalorder %s24, 1
    %p168 = por %p166, %p167
    %p169 = scmp.ne.s32.totalorder %s160, %s161
    %p170 = scmp.eq.s32.totalorder %s24, 0
    %p171 = por %p169, %p170
    %p172 = scmp.ne.s32.totalorder %s160, %s161
    %p173 = scmp.eq.s32.totalorder %s25, 1
    %p174 = por %p172, %p173
    %p176 = scmp.ne.s32.totalorder %s161, %s175
    %p177 = scmp.eq.s32.totalorder %s25, 0
    %p178 = por %p176, %p177
    %s180 = sadd.s32 %s179, 1
    %p183 = scmp.eq.s32.totalorder %s19, 1
    %p184 = scmp.ne.s32.totalorder %s179, %s181
    %p185 = scmp.eq.s32.totalorder %s19, 0
    %p186 = por %p184, %p185
    %p187 = scmp.ne.s32.totalorder %s179, %s181
    %p188 = scmp.eq.s32.totalorder %s24, 1
    %p189 = por %p187, %p188
    %p190 = scmp.ne.s32.totalorder %s181, %s182
    %p191 = scmp.eq.s32.totalorder %s24, 0
    %p192 = por %p190, %p191
    %p193 = scmp.ne.s32.totalorder %s181, %s182
    %p194 = scmp.eq.s32.totalorder %s25, 1
    %p195 = por %p193, %p194
    %p197 = scmp.ne.s32.totalorder %s182, %s196
    %p198 = scmp.eq.s32.totalorder %s25, 0
    %p199 = por %p197, %p198
    %s201 = sadd.s32 %s200, 1
    %p204 = scmp.eq.s32.totalorder %s19, 1
    %p205 = scmp.ne.s32.totalorder %s200, %s202
    %p206 = scmp.eq.s32.totalorder %s19, 0
    %p207 = por %p205, %p206
    %p208 = scmp.ne.s32.totalorder %s200, %s202
    %p209 = scmp.eq.s32.totalorder %s24, 1
    %p210 = por %p208, %p209
    %p211 = scmp.ne.s32.totalorder %s202, %s203
    %p212 = scmp.eq.s32.totalorder %s24, 0
    %p213 = por %p211, %p212
    %p214 = scmp.ne.s32.totalorder %s202, %s203
    %p215 = scmp.eq.s32.totalorder %s25, 1
    %p216 = por %p214, %p215
    %p218 = scmp.ne.s32.totalorder %s203, %s217
    %p219 = scmp.eq.s32.totalorder %s25, 0
    %p220 = por %p218, %p219
    %s222 = sadd.s32 %s221, 1
    %p225 = scmp.eq.s32.totalorder %s19, 1
    %p226 = scmp.ne.s32.totalorder %s221, %s223
    %p227 = scmp.eq.s32.totalorder %s19, 0
    %p228 = por %p226, %p227
    %p229 = scmp.ne.s32.totalorder %s221, %s223
    %p230 = scmp.eq.s32.totalorder %s24, 1
    %p231 = por %p229, %p230
    %p232 = scmp.ne.s32.totalorder %s223, %s224
    %p233 = scmp.eq.s32.totalorder %s24, 0
    %p234 = por %p232, %p233
    %p235 = scmp.ne.s32.totalorder %s223, %s224
    %p236 = scmp.eq.s32.totalorder %s25, 1
    %p237 = por %p235, %p236
    %p239 = scmp.ne.s32.totalorder %s224, %s238
    %p240 = scmp.eq.s32.totalorder %s25, 0
    %p241 = por %p239, %p240
    %s243 = sadd.s32 %s242, 1
    %p246 = scmp.eq.s32.totalorder %s19, 1
    %p247 = scmp.ne.s32.totalorder %s242, %s244
    %p248 = scmp.eq.s32.totalorder %s19, 0
    %p249 = por %p247, %p248
    %p250 = scmp.ne.s32.totalorder %s242, %s244
    %p251 = scmp.eq.s32.totalorder %s24, 1
    %p252 = por %p250, %p251
    %p253 = scmp.ne.s32.totalorder %s244, %s245
    %p254 = scmp.eq.s32.totalorder %s24, 0
    %p255 = por %p253, %p254
    %p256 = scmp.ne.s32.totalorder %s244, %s245
    %p257 = scmp.eq.s32.totalorder %s25, 1
    %p258 = por %p256, %p257
    %p260 = scmp.ne.s32.totalorder %s245, %s259
    %p261 = scmp.eq.s32.totalorder %s25, 0
    %p262 = por %p260, %p261
    %s264 = sadd.s32 %s263, 1
    %p267 = scmp.eq.s32.totalorder %s19, 1
    %p268 = scmp.ne.s32.totalorder %s263, %s265
    %p269 = scmp.eq.s32.totalorder %s19, 0
    %p270 = por %p268, %p269
    %p271 = scmp.ne.s32.totalorder %s263, %s265
    %p272 = scmp.eq.s32.totalorder %s24, 1
    %p273 = por %p271, %p272
    %p274 = scmp.ne.s32.totalorder %s265, %s266
    %p275 = scmp.eq.s32.totalorder %s24, 0
    %p276 = por %p274, %p275
    %p277 = scmp.ne.s32.totalorder %s265, %s266
    %p278 = scmp.eq.s32.totalorder %s25, 1
    %p279 = por %p277, %p278
    %p281 = scmp.ne.s32.totalorder %s266, %s280
    %p282 = scmp.eq.s32.totalorder %s25, 0
    %p283 = por %p281, %p282
    %s285 = sadd.s32 %s284, 1
    %p288 = scmp.eq.s32.totalorder %s19, 1
    %p289 = scmp.ne.s32.totalorder %s284, %s286
    %p290 = scmp.eq.s32.totalorder %s19, 0
    %p291 = por %p289, %p290
    %p292 = scmp.ne.s32.totalorder %s284, %s286
    %p293 = scmp.eq.s32.totalorder %s24, 1
    %p294 = por %p292, %p293
    %p295 = scmp.ne.s32.totalorder %s286, %s287
    %p296 = scmp.eq.s32.totalorder %s24, 0
    %p297 = por %p295, %p296
    %p298 = scmp.ne.s32.totalorder %s286, %s287
    %p299 = scmp.eq.s32.totalorder %s25, 1
    %p300 = por %p298, %p299
    %p302 = scmp.ne.s32.totalorder %s287, %s301
    %p303 = scmp.eq.s32.totalorder %s25, 0
    %p304 = por %p302, %p303
    %s305 = ssub.s32 %s19, %s26
    %p306 = scmp.eq.s32.totalorder %s305, 0
    %s308 = sadd.s32 %s307, 1
    %s309 = scalar_select %p306, %s307, %s308
    %p312 = pneg %p306
    %p313 = scmp.eq.s32.totalorder %s19, 1
    %p314 = por %p312, %p313
    %p315 = scmp.ne.s32.totalorder %s307, %s310
    %p316 = scmp.eq.s32.totalorder %s19, 0
    %p317 = por %p315, %p316
    %p318 = scmp.ne.s32.totalorder %s307, %s310
    %p319 = scmp.eq.s32.totalorder %s24, 1
    %p320 = por %p318, %p319
    %p321 = scmp.ne.s32.totalorder %s310, %s311
    %p322 = scmp.eq.s32.totalorder %s24, 0
    %p323 = por %p321, %p322
    %p324 = scmp.ne.s32.totalorder %s310, %s311
    %p325 = scmp.eq.s32.totalorder %s25, 1
    %p326 = por %p324, %p325
    %p328 = scmp.ne.s32.totalorder %s311, %s327
    %p329 = scmp.eq.s32.totalorder %s25, 0
    %p330 = por %p328, %p329
    %p331 = scmp.le.s32.totalorder 1, %s19
    %p332 = scmp.lt.s32.totalorder %s19, 3
    %p333 = pnand %p331, %p332
    %p334 = pneg %p333
    // Predicated region
    $region9: #{autoencoder_forward.1} parent=5 // pred_check
      _
    $region10: #{autoencoder_forward.1} parent=5 // pred_check_branch
      %336 = sbr.rel (%p333) target = $region12
    $region11: #{autoencoder_forward.1} parent=5 // pred_region
      %s337 = ssub.s32 %s19, 1
      // Predicated region
      $region13: #{autoencoder_forward.1} parent=11 // pred_check
        %p338 = pneg %p66
      $region14: #{autoencoder_forward.1} parent=11 // pred_check_branch
        %340 = sbr.rel (%p338) target = $region16
      $region15: #{autoencoder_forward.1} parent=11 // pred_region
        _
      $region16: #{autoencoder_forward.1} parent=11 // pred_fallthru
        _
      // Predicated region
      $region17: #{autoencoder_forward.1} parent=11 // pred_check
        %p341 = pneg %p87
      $region18: #{autoencoder_forward.1} parent=11 // pred_check_branch
        %343 = sbr.rel (%p341) target = $region20
      $region19: #{autoencoder_forward.1} parent=11 // pred_region
        _
      $region20: #{autoencoder_forward.1} parent=11 // pred_fallthru
        _
      // Predicated region
      $region21: #{autoencoder_forward.1} parent=11 // pred_check
        %p344 = pneg %p108
      $region22: #{autoencoder_forward.1} parent=11 // pred_check_branch
        %346 = sbr.rel (%p344) target = $region24
      $region23: #{autoencoder_forward.1} parent=11 // pred_region
        _
      $region24: #{autoencoder_forward.1} parent=11 // pred_fallthru
        _
      // Predicated region
      $region25: #{autoencoder_forward.1} parent=11 // pred_check
        %p347 = pneg %p129
      $region26: #{autoencoder_forward.1} parent=11 // pred_check_branch
        %349 = sbr.rel (%p347) target = $region28
      $region27: #{autoencoder_forward.1} parent=11 // pred_region
        _
      $region28: #{autoencoder_forward.1} parent=11 // pred_fallthru
        _
      // Predicated region
      $region29: #{autoencoder_forward.1} parent=11 // pred_check
        %p350 = pneg %p150
      $region30: #{autoencoder_forward.1} parent=11 // pred_check_branch
        %352 = sbr.rel (%p350) target = $region32
      $region31: #{autoencoder_forward.1} parent=11 // pred_region
        _
      $region32: #{autoencoder_forward.1} parent=11 // pred_fallthru
        _
      // Predicated region
      $region33: #{autoencoder_forward.1} parent=11 // pred_check
        %p353 = pneg %p171
      $region34: #{autoencoder_forward.1} parent=11 // pred_check_branch
        %355 = sbr.rel (%p353) target = $region36
      $region35: #{autoencoder_forward.1} parent=11 // pred_region
        _
      $region36: #{autoencoder_forward.1} parent=11 // pred_fallthru
        _
      // Predicated region
      $region37: #{autoencoder_forward.1} parent=11 // pred_check
        %p356 = pneg %p192
      $region38: #{autoencoder_forward.1} parent=11 // pred_check_branch
        %358 = sbr.rel (%p356) target = $region40
      $region39: #{autoencoder_forward.1} parent=11 // pred_region
        _
      $region40: #{autoencoder_forward.1} parent=11 // pred_fallthru
        _
      // Predicated region
      $region41: #{autoencoder_forward.1} parent=11 // pred_check
        %p359 = pneg %p213
      $region42: #{autoencoder_forward.1} parent=11 // pred_check_branch
        %361 = sbr.rel (%p359) target = $region44
      $region43: #{autoencoder_forward.1} parent=11 // pred_region
        _
      $region44: #{autoencoder_forward.1} parent=11 // pred_fallthru
        _
      // Predicated region
      $region45: #{autoencoder_forward.1} parent=11 // pred_check
        %p362 = pneg %p234
      $region46: #{autoencoder_forward.1} parent=11 // pred_check_branch
        %364 = sbr.rel (%p362) target = $region48
      $region47: #{autoencoder_forward.1} parent=11 // pred_region
        _
      $region48: #{autoencoder_forward.1} parent=11 // pred_fallthru
        _
      // Predicated region
      $region49: #{autoencoder_forward.1} parent=11 // pred_check
        %p365 = pneg %p255
      $region50: #{autoencoder_forward.1} parent=11 // pred_check_branch
        %367 = sbr.rel (%p365) target = $region52
      $region51: #{autoencoder_forward.1} parent=11 // pred_region
        _
      $region52: #{autoencoder_forward.1} parent=11 // pred_fallthru
        _
      // Predicated region
      $region53: #{autoencoder_forward.1} parent=11 // pred_check
        %p368 = pneg %p276
      $region54: #{autoencoder_forward.1} parent=11 // pred_check_branch
        %370 = sbr.rel (%p368) target = $region56
      $region55: #{autoencoder_forward.1} parent=11 // pred_region
        _
      $region56: #{autoencoder_forward.1} parent=11 // pred_fallthru
        _
      // Predicated region
      $region57: #{autoencoder_forward.1} parent=11 // pred_check
        %p371 = pneg %p297
      $region58: #{autoencoder_forward.1} parent=11 // pred_check_branch
        %373 = sbr.rel (%p371) target = $region60
      $region59: #{autoencoder_forward.1} parent=11 // pred_region
        _
      $region60: #{autoencoder_forward.1} parent=11 // pred_fallthru
        _
    $region12: #{autoencoder_forward.1} parent=5 // pred_fallthru
      _
    %p374 = scmp.lt.s32.totalorder %s19, 2
    // Predicated region
    $region61: #{autoencoder_forward.1} parent=5 // pred_check
      %p375 = pneg %p374
    $region62: #{autoencoder_forward.1} parent=5 // pred_check_branch
      %377 = sbr.rel (%p375) target = $region64
    $region63: #{autoencoder_forward.1} parent=5 // pred_region
      // Predicated region
      $region65: #{autoencoder_forward.1} parent=63 // pred_check
        %p378 = pneg %p39
      $region66: #{autoencoder_forward.1} parent=63 // pred_check_branch
        %380 = sbr.rel (%p378) target = $region68
      $region67: #{autoencoder_forward.1} parent=63 // pred_region
        %s381 = smul.u32 4, %s19
        %p382 = scmp.lt.s32.totalorder %s381, 7
        %s383 = scalar_select %p382, %s381, 7
        %s384 = smul.addr %s383, 8
        %s385 = scalar_lea.vmem %s0, %s384
        %s386 = smul.u32 4, %s19
      $region68: #{autoencoder_forward.1} parent=63 // pred_fallthru
        _
    $region64: #{autoencoder_forward.1} parent=5 // pred_fallthru
      _
    %p387 = scmp.le.s32.totalorder 1, %s19
    %p388 = scmp.lt.s32.totalorder %s19, 3
    %p389 = pnand %p387, %p388
    %p390 = pneg %p389
    // Predicated region
    $region69: #{autoencoder_forward.1} parent=5 // pred_check
      _
    $region70: #{autoencoder_forward.1} parent=5 // pred_check_branch
      %392 = sbr.rel (%p389) target = $region72
    $region71: #{autoencoder_forward.1} parent=5 // pred_region
      %s393 = ssub.s32 %s19, 1
      %s394 = smul.u32 4, %s24
      %p395 = scmp.lt.s32.totalorder %s394, 7
      %s396 = scalar_select %p395, %s394, 7
      %s397 = smul.addr %s396, 8
      %s398 = scalar_lea.vmem %s0, %s397
      %p399 = pneg %p45
      %p400 = pneg %p42
      %p401 = pneg %p66
      %p402 = pneg %p63
      %p403 = pneg %p87
      %p404 = pneg %p84
      %p405 = pneg %p108
      %p406 = pneg %p105
      %p407 = pneg %p129
      %p408 = pneg %p126
      %p409 = pneg %p150
      %p410 = pneg %p147
      %p411 = pneg %p171
      %p412 = pneg %p168
      %p413 = pneg %p192
      %p414 = pneg %p189
      %p415 = pneg %p213
      %p416 = pneg %p210
      %p417 = pneg %p234
      %p418 = pneg %p231
      %p419 = pneg %p255
      %p420 = pneg %p252
      %p421 = pneg %p276
      %p422 = pneg %p273
      %p423 = pneg %p297
      %p424 = pneg %p294
      %p425 = pneg %p323
      %p426 = pneg %p320
      %s427 = smul.u32 4, %s24
      %p428 = scmp.lt.s32.totalorder %s427, 7
      %s429 = scalar_select %p428, %s427, 7
      %s430 = smul.addr %s429, 8
      %s431 = scalar_lea.vmem %s13, %s430
      %s432 = smul.u32 4, %s24
      %p433 = scmp.lt.s32.totalorder %s432, 7
      %s434 = scalar_select %p433, %s432, 7
      %s435 = smul.addr %s434, 8
      %s436 = scalar_lea.vmem %s0, %s435
      %s437 = smul.u32 4, %s24
      %s438 = smul.u32 4, %s24
      %p439 = scmp.lt.s32.totalorder %s438, 7
      %s440 = scalar_select %p439, %s438, 7
      %s441 = smul.addr %s440, 8
      %s442 = scalar_lea.vmem %s13, %s441
      %s443 = smul.u32 4, %s24
      %v445 = vld [vmem:[%s436] sm:$0xff]
      %v446 = vld [vmem:[%s436 + $0x8] sm:$0xff]
      %v447 = vld [vmem:[%s436 + $0x10] sm:$0xff]
      %v448 = vld [vmem:[%s436 + $0x18] sm:$0xff]
      %v449 = vpack.c.bf16 %v446, %v445
      %v450 = vpack.c.bf16 %v448, %v447
      %v451 = vld [vmem:[%s1] sm:$0xff]
      %v452 = vld [vmem:[%s1 + $0x8] sm:$0xff]
      %v453 = vld [vmem:[%s1 + $0x10] sm:$0xff]
      %v454 = vld [vmem:[%s1 + $0x18] sm:$0xff]
      %v455 = vld [vmem:[%s1 + $0x20] sm:$0xff]
      %v456 = vld [vmem:[%s1 + $0x28] sm:$0xff]
      %v457 = vld [vmem:[%s1 + $0x30] sm:$0xff]
      %v458 = vld [vmem:[%s1 + $0x38] sm:$0xff]
      %v459 = vld [vmem:[%s1 + $0x40] sm:$0xff]
      %v460 = vld [vmem:[%s1 + $0x48] sm:$0xff]
      %v461 = vld [vmem:[%s1 + $0x50] sm:$0xff]
      %v462 = vld [vmem:[%s1 + $0x58] sm:$0xff]
      %v463 = vld [vmem:[%s1 + $0x60] sm:$0xff]
      %v464 = vld [vmem:[%s1 + $0x68] sm:$0xff]
      %v465 = vld [vmem:[%s1 + $0x70] sm:$0xff]
      %v466 = vld [vmem:[%s1 + $0x78] sm:$0xff]
      %v467 = vld [vmem:[%s2] sm:$0x3]
      %v469 = vperm.slane %v467, 0
      %v470 = vperm.slane %v467, 1
      %v489 = vunpack.c.l.b16 %v451
      %v490 = vunpack.c.h.b16 %v451
      %v491 = vunpack.c.l.b16 %v452
      %v492 = vunpack.c.h.b16 %v452
      %v493 = vunpack.c.l.b16 %v453
      %v494 = vunpack.c.h.b16 %v453
      %v495 = vunpack.c.l.b16 %v454
      %v496 = vunpack.c.h.b16 %v454
      %v497 = vunpack.c.l.b16 %v455
      %v498 = vunpack.c.h.b16 %v455
      %v499 = vunpack.c.l.b16 %v456
      %v500 = vunpack.c.h.b16 %v456
      %v501 = vunpack.c.l.b16 %v457
      %v502 = vunpack.c.h.b16 %v457
      %v503 = vunpack.c.l.b16 %v458
      %v504 = vunpack.c.h.b16 %v458
      %v505 = vunpack.c.l.b16 %v459
      %v506 = vunpack.c.h.b16 %v459
      %v507 = vunpack.c.l.b16 %v460
      %v508 = vunpack.c.h.b16 %v460
      %v509 = vunpack.c.l.b16 %v461
      %v510 = vunpack.c.h.b16 %v461
      %v511 = vunpack.c.l.b16 %v462
      %v512 = vunpack.c.h.b16 %v462
      %v513 = vunpack.c.l.b16 %v463
      %v514 = vunpack.c.h.b16 %v463
      %v515 = vunpack.c.l.b16 %v464
      %v516 = vunpack.c.h.b16 %v464
      %v517 = vunpack.c.l.b16 %v465
      %v518 = vunpack.c.h.b16 %v465
      %v519 = vunpack.c.l.b16 %v466
      %v520 = vunpack.c.h.b16 %v466
      %v521 = vpack.c.b16 %v491, %v489
      %v522 = vpack.c.b16 %v492, %v490
      %v523 = vpack.c.b16 %v495, %v493
      %v524 = vpack.c.b16 %v496, %v494
      %v525 = vpack.c.b16 %v499, %v497
      %v526 = vpack.c.b16 %v500, %v498
      %v527 = vpack.c.b16 %v503, %v501
      %v528 = vpack.c.b16 %v504, %v502
      %v529 = vpack.c.b16 %v507, %v505
      %v530 = vpack.c.b16 %v508, %v506
      %v531 = vpack.c.b16 %v511, %v509
      %v532 = vpack.c.b16 %v512, %v510
      %v533 = vpack.c.b16 %v515, %v513
      %v534 = vpack.c.b16 %v516, %v514
      %v535 = vpack.c.b16 %v519, %v517
      %v536 = vpack.c.b16 %v520, %v518
      %553 = vmatpush.bf16.msra.mxu0 %v535
      %554 = vmatpush.bf16.msra.mxu0 %v533
      %555 = vmatpush.bf16.msra.mxu0 %v531
      %556 = vmatpush.bf16.msra.mxu0 %v529
      %557 = vmatpush.bf16.msra.mxu0 %v527
      %558 = vmatpush.bf16.msra.mxu0 %v525
      %559 = vmatpush.bf16.msra.mxu0 %v523
      %560 = vmatpush.bf16.msra.mxu0 %v521
      %561 = vmatmul.bf16.gmra.mxu0 %v449
      %v562 = vpop.f32.mrf.mxu0
      %v563 = vadd.f32 %v469, %v562
      %v564 = vpop.f32.mrf.mxu0
      %v565 = vadd.f32 %v469, %v564
      %566 = vmatmul.bf16.gmra.mxu0 %v450
      %v567 = vpop.f32.mrf.mxu0
      %v568 = vadd.f32 %v469, %v567
      %v569 = vpop.f32.mrf.mxu0
      %v570 = vadd.f32 %v469, %v569
      %571 = vdwg.mxu0
      %572 = vmatpush.bf16.msra.mxu0 %v536
      %573 = vmatpush.bf16.msra.mxu0 %v534
      %574 = vmatpush.bf16.msra.mxu0 %v532
      %575 = vmatpush.bf16.msra.mxu0 %v530
      %576 = vmatpush.bf16.msra.mxu0 %v528
      %577 = vmatpush.bf16.msra.mxu0 %v526
      %578 = vmatpush.bf16.msra.mxu0 %v524
      %579 = vmatpush.bf16.msra.mxu0 %v522
      %580 = vmatmul.bf16.gmra.mxu0 %v449
      %v581 = vpop.f32.mrf.mxu0
      %v582 = vadd.f32 %v470, %v581
      %v583 = vpop.f32.mrf.mxu0
      %v584 = vadd.f32 %v470, %v583
      %585 = vmatmul.bf16.gmra.mxu0 %v450
      %v586 = vpop.f32.mrf.mxu0
      %v587 = vadd.f32 %v470, %v586
      %v588 = vpop.f32.mrf.mxu0
      %v589 = vadd.f32 %v470, %v588
      %590 = vdwg.mxu0
      %v591 = vmax.f32 %v563, 0.0
      %v592 = vmax.f32 %v582, 0.0
      %v593 = vmax.f32 %v565, 0.0
      %v594 = vmax.f32 %v584, 0.0
      %v595 = vmax.f32 %v568, 0.0
      %v596 = vmax.f32 %v587, 0.0
      %v597 = vmax.f32 %v570, 0.0
      %v598 = vmax.f32 %v589, 0.0
      %v599 = vpack.c.bf16 %v593, %v591
      %v600 = vpack.c.bf16 %v594, %v592
      %v601 = vpack.c.bf16 %v597, %v595
      %v602 = vpack.c.bf16 %v598, %v596
      %v603 = vld [vmem:[%s3] sm:$0xf]
      %v604 = vld [vmem:[%s3 + $0x4] sm:$0xf]
      %v605 = vld [vmem:[%s3 + $0x8] sm:$0xf]
      %v606 = vld [vmem:[%s3 + $0xc] sm:$0xf]
      %v607 = vld [vmem:[%s3 + $0x10] sm:$0xf]
      %v608 = vld [vmem:[%s3 + $0x14] sm:$0xf]
      %v609 = vld [vmem:[%s3 + $0x18] sm:$0xf]
      %v610 = vld [vmem:[%s3 + $0x1c] sm:$0xf]
      %v611 = vld [vmem:[%s3 + $0x20] sm:$0xf]
      %v612 = vld [vmem:[%s3 + $0x24] sm:$0xf]
      %v613 = vld [vmem:[%s3 + $0x28] sm:$0xf]
      %v614 = vld [vmem:[%s3 + $0x2c] sm:$0xf]
      %v615 = vld [vmem:[%s3 + $0x30] sm:$0xf]
      %v616 = vld [vmem:[%s3 + $0x34] sm:$0xf]
      %v617 = vld [vmem:[%s3 + $0x38] sm:$0xf]
      %v618 = vld [vmem:[%s3 + $0x3c] sm:$0xf]
      %v619 = vld [vmem:[%s3 + $0x40] sm:$0xf]
      %v620 = vld [vmem:[%s3 + $0x44] sm:$0xf]
      %v621 = vld [vmem:[%s3 + $0x48] sm:$0xf]
      %v622 = vld [vmem:[%s3 + $0x4c] sm:$0xf]
      %v623 = vld [vmem:[%s3 + $0x50] sm:$0xf]
      %v624 = vld [vmem:[%s3 + $0x54] sm:$0xf]
      %v625 = vld [vmem:[%s3 + $0x58] sm:$0xf]
      %v626 = vld [vmem:[%s3 + $0x5c] sm:$0xf]
      %v627 = vld [vmem:[%s3 + $0x60] sm:$0xf]
      %v628 = vld [vmem:[%s3 + $0x64] sm:$0xf]
      %v629 = vld [vmem:[%s3 + $0x68] sm:$0xf]
      %v630 = vld [vmem:[%s3 + $0x6c] sm:$0xf]
      %v631 = vld [vmem:[%s3 + $0x70] sm:$0xf]
      %v632 = vld [vmem:[%s3 + $0x74] sm:$0xf]
      %v633 = vld [vmem:[%s3 + $0x78] sm:$0xf]
      %v634 = vld [vmem:[%s3 + $0x7c] sm:$0xf]
      %v635 = vld [vmem:[%s4] sm:$0x1]
      %v637 = vperm.slane %v635, 0
      %v671 = vunpack.c.l.b16 %v603
      %v672 = vunpack.c.l.b16 %v604
      %v673 = vunpack.c.l.b16 %v605
      %v674 = vunpack.c.l.b16 %v606
      %v675 = vunpack.c.l.b16 %v607
      %v676 = vunpack.c.l.b16 %v608
      %v677 = vunpack.c.l.b16 %v609
      %v678 = vunpack.c.l.b16 %v610
      %v679 = vunpack.c.l.b16 %v611
      %v680 = vunpack.c.l.b16 %v612
      %v681 = vunpack.c.l.b16 %v613
      %v682 = vunpack.c.l.b16 %v614
      %v683 = vunpack.c.l.b16 %v615
      %v684 = vunpack.c.l.b16 %v616
      %v685 = vunpack.c.l.b16 %v617
      %v686 = vunpack.c.l.b16 %v618
      %v687 = vunpack.c.l.b16 %v619
      %v688 = vunpack.c.l.b16 %v620
      %v689 = vunpack.c.l.b16 %v621
      %v690 = vunpack.c.l.b16 %v622
      %v691 = vunpack.c.l.b16 %v623
      %v692 = vunpack.c.l.b16 %v624
      %v693 = vunpack.c.l.b16 %v625
      %v694 = vunpack.c.l.b16 %v626
      %v695 = vunpack.c.l.b16 %v627
      %v696 = vunpack.c.l.b16 %v628
      %v697 = vunpack.c.l.b16 %v629
      %v698 = vunpack.c.l.b16 %v630
      %v699 = vunpack.c.l.b16 %v631
      %v700 = vunpack.c.l.b16 %v632
      %v701 = vunpack.c.l.b16 %v633
      %v702 = vunpack.c.l.b16 %v634
      %v703 = vpack.c.b16 %v672, %v671
      %v704 = vpack.c.b16 %v674, %v673
      %v705 = vpack.c.b16 %v676, %v675
      %v706 = vpack.c.b16 %v678, %v677
      %v707 = vpack.c.b16 %v680, %v679
      %v708 = vpack.c.b16 %v682, %v681
      %v709 = vpack.c.b16 %v684, %v683
      %v710 = vpack.c.b16 %v686, %v685
      %v711 = vpack.c.b16 %v688, %v687
      %v712 = vpack.c.b16 %v690, %v689
      %v713 = vpack.c.b16 %v692, %v691
      %v714 = vpack.c.b16 %v694, %v693
      %v715 = vpack.c.b16 %v696, %v695
      %v716 = vpack.c.b16 %v698, %v697
      %v717 = vpack.c.b16 %v700, %v699
      %v718 = vpack.c.b16 %v702, %v701
      %735 = vmatpush.bf16.msra.mxu0 %v710
      %736 = vmatpush.bf16.msra.mxu0 %v709
      %737 = vmatpush.bf16.msra.mxu0 %v708
      %738 = vmatpush.bf16.msra.mxu0 %v707
      %739 = vmatpush.bf16.msra.mxu0 %v706
      %740 = vmatpush.bf16.msra.mxu0 %v705
      %741 = vmatpush.bf16.msra.mxu0 %v704
      %742 = vmatpush.bf16.msra.mxu0 %v703
      %743 = vmatmul.bf16.gmra.mxu0 %v599
      %v744 = vpop.f32.mrf.mxu0
      %v745 = vadd.f32 %v637, %v744
      %v746 = vpop.f32.mrf.mxu0
      %v747 = vadd.f32 %v637, %v746
      %748 = vmatmul.bf16.gmra.mxu0 %v601
      %v749 = vpop.f32.mrf.mxu0
      %v750 = vadd.f32 %v637, %v749
      %v751 = vpop.f32.mrf.mxu0
      %v752 = vadd.f32 %v637, %v751
      %753 = vdwg.mxu0
      %754 = vmatpush.bf16.msra.mxu0 %v718
      %755 = vmatpush.bf16.msra.mxu0 %v717
      %756 = vmatpush.bf16.msra.mxu0 %v716
      %757 = vmatpush.bf16.msra.mxu0 %v715
      %758 = vmatpush.bf16.msra.mxu0 %v714
      %759 = vmatpush.bf16.msra.mxu0 %v713
      %760 = vmatpush.bf16.msra.mxu0 %v712
      %761 = vmatpush.bf16.msra.mxu0 %v711
      %762 = vmatmul.bf16.gmra.mxu0 %v600
      %v763 = vpop.f32.mrf.mxu0
      %v764 = vadd.f32 %v745, %v763
      %v765 = vpop.f32.mrf.mxu0
      %v766 = vadd.f32 %v747, %v765
      %767 = vmatmul.bf16.gmra.mxu0 %v602
      %v768 = vpop.f32.mrf.mxu0
      %v769 = vadd.f32 %v750, %v768
      %v770 = vpop.f32.mrf.mxu0
      %v771 = vadd.f32 %v752, %v770
      %772 = vdwg.mxu0
      %v773 = vmax.f32 %v764, 0.0
      %v774 = vmax.f32 %v766, 0.0
      %v775 = vmax.f32 %v769, 0.0
      %v776 = vmax.f32 %v771, 0.0
      %v777 = vpack.c.bf16 %v774, %v773
      %v778 = vpack.c.bf16 %v776, %v775
      %v779 = vld [vmem:[%s5] sm:$0xf]
      %v780 = vld [vmem:[%s5 + $0x4] sm:$0xf]
      %v781 = vld [vmem:[%s5 + $0x8] sm:$0xf]
      %v782 = vld [vmem:[%s5 + $0xc] sm:$0xf]
      %v783 = vld [vmem:[%s5 + $0x10] sm:$0xf]
      %v784 = vld [vmem:[%s5 + $0x14] sm:$0xf]
      %v785 = vld [vmem:[%s5 + $0x18] sm:$0xf]
      %v786 = vld [vmem:[%s5 + $0x1c] sm:$0xf]
      %v787 = vld [vmem:[%s5 + $0x20] sm:$0xf]
      %v788 = vld [vmem:[%s5 + $0x24] sm:$0xf]
      %v789 = vld [vmem:[%s5 + $0x28] sm:$0xf]
      %v790 = vld [vmem:[%s5 + $0x2c] sm:$0xf]
      %v791 = vld [vmem:[%s5 + $0x30] sm:$0xf]
      %v792 = vld [vmem:[%s5 + $0x34] sm:$0xf]
      %v793 = vld [vmem:[%s5 + $0x38] sm:$0xf]
      %v794 = vld [vmem:[%s5 + $0x3c] sm:$0xf]
      %v795 = vld [vmem:[%s6] sm:$0x1]
      %v797 = vperm.slane %v795, 0
      %v815 = vunpack.c.l.b16 %v779
      %v816 = vunpack.c.l.b16 %v780
      %v817 = vunpack.c.l.b16 %v781
      %v818 = vunpack.c.l.b16 %v782
      %v819 = vunpack.c.l.b16 %v783
      %v820 = vunpack.c.l.b16 %v784
      %v821 = vunpack.c.l.b16 %v785
      %v822 = vunpack.c.l.b16 %v786
      %v823 = vunpack.c.l.b16 %v787
      %v824 = vunpack.c.l.b16 %v788
      %v825 = vunpack.c.l.b16 %v789
      %v826 = vunpack.c.l.b16 %v790
      %v827 = vunpack.c.l.b16 %v791
      %v828 = vunpack.c.l.b16 %v792
      %v829 = vunpack.c.l.b16 %v793
      %v830 = vunpack.c.l.b16 %v794
      %v831 = vpack.c.b16 %v816, %v815
      %v832 = vpack.c.b16 %v818, %v817
      %v833 = vpack.c.b16 %v820, %v819
      %v834 = vpack.c.b16 %v822, %v821
      %v835 = vpack.c.b16 %v824, %v823
      %v836 = vpack.c.b16 %v826, %v825
      %v837 = vpack.c.b16 %v828, %v827
      %v838 = vpack.c.b16 %v830, %v829
      %847 = vmatpush.bf16.msra.mxu0 %v838
      %848 = vmatpush.bf16.msra.mxu0 %v837
      %849 = vmatpush.bf16.msra.mxu0 %v836
      %850 = vmatpush.bf16.msra.mxu0 %v835
      %851 = vmatpush.bf16.msra.mxu0 %v834
      %852 = vmatpush.bf16.msra.mxu0 %v833
      %853 = vmatpush.bf16.msra.mxu0 %v832
      %854 = vmatpush.bf16.msra.mxu0 %v831
      %855 = vmatmul.bf16.gmra.mxu0 %v777
      %v856 = vpop.f32.mrf.mxu0
      %v857 = vadd.f32 %v797, %v856
      %v858 = vpop.f32.mrf.mxu0
      %v859 = vadd.f32 %v797, %v858
      %860 = vmatmul.bf16.gmra.mxu0 %v778
      %v861 = vpop.f32.mrf.mxu0
      %v862 = vadd.f32 %v797, %v861
      %v863 = vpop.f32.mrf.mxu0
      %v864 = vadd.f32 %v797, %v863
      %865 = vdwg.mxu0
      %v866 = vmax.f32 %v857, 0.0
      %v867 = vmax.f32 %v859, 0.0
      %v868 = vmax.f32 %v862, 0.0
      %v869 = vmax.f32 %v864, 0.0
      %v870 = vpack.c.bf16 %v867, %v866
      %v871 = vpack.c.bf16 %v869, %v868
      %v872 = vld [vmem:[%s7] sm:$0xf]
      %v873 = vld [vmem:[%s7 + $0x4] sm:$0xf]
      %v874 = vld [vmem:[%s7 + $0x8] sm:$0xf]
      %v875 = vld [vmem:[%s7 + $0xc] sm:$0xf]
      %v876 = vld [vmem:[%s7 + $0x10] sm:$0xf]
      %v877 = vld [vmem:[%s7 + $0x14] sm:$0xf]
      %v878 = vld [vmem:[%s7 + $0x18] sm:$0xf]
      %v879 = vld [vmem:[%s7 + $0x1c] sm:$0xf]
      %v880 = vld [vmem:[%s8] sm:$0x1]
      %v882 = vperm.slane %v880, 0
      %v892 = vunpack.c.l.b16 %v872
      %v893 = vunpack.c.l.b16 %v873
      %v894 = vunpack.c.l.b16 %v874
      %v895 = vunpack.c.l.b16 %v875
      %v896 = vunpack.c.l.b16 %v876
      %v897 = vunpack.c.l.b16 %v877
      %v898 = vunpack.c.l.b16 %v878
      %v899 = vunpack.c.l.b16 %v879
      %v900 = vpack.c.b16 %v893, %v892
      %v901 = vpack.c.b16 %v895, %v894
      %v902 = vpack.c.b16 %v897, %v896
      %v903 = vpack.c.b16 %v899, %v898
      %vm908 = vcmask 523264
      %v910 = vsel %vm908, %v870, 0
      %v913 = vsel %vm908, %v871, 0
      %915 = vmatpush.bf16.msra.mxu0 0
      %916 = vmatpush.bf16.msra.mxu0 0
      %917 = vmatpush.bf16.msra.mxu0 0
      %918 = vmatpush.bf16.msra.mxu0 0
      %919 = vmatpush.bf16.msra.mxu0 %v903
      %920 = vmatpush.bf16.msra.mxu0 %v902
      %921 = vmatpush.bf16.msra.mxu0 %v901
      %922 = vmatpush.bf16.msra.mxu0 %v900
      %923 = vmatmul.bf16.gmra.mxu0 %v910
      %v924 = vpop.f32.mrf.mxu0
      %v925 = vadd.f32 %v882, %v924
      %v926 = vpop.f32.mrf.mxu0
      %v927 = vadd.f32 %v882, %v926
      %928 = vmatmul.bf16.gmra.mxu0 %v913
      %v929 = vpop.f32.mrf.mxu0
      %v930 = vadd.f32 %v882, %v929
      %v931 = vpop.f32.mrf.mxu0
      %v932 = vadd.f32 %v882, %v931
      %933 = vdwg.mxu0
      %v934 = vmax.f32 %v925, 0.0
      %v935 = vmax.f32 %v927, 0.0
      %v936 = vmax.f32 %v930, 0.0
      %v937 = vmax.f32 %v932, 0.0
      %v938 = vpack.c.bf16 %v935, %v934
      %v939 = vpack.c.bf16 %v937, %v936
      %v940 = vld [vmem:[%s9] sm:$0xff]
      %v941 = vld [vmem:[%s9 + $0x8] sm:$0xff]
      %v942 = vld [vmem:[%s9 + $0x10] sm:$0xff]
      %v943 = vld [vmem:[%s9 + $0x18] sm:$0xff]
      %v944 = vld [vmem:[%s9 + $0x20] sm:$0xff]
      %v945 = vld [vmem:[%s9 + $0x28] sm:$0xff]
      %v946 = vld [vmem:[%s9 + $0x30] sm:$0xff]
      %v947 = vld [vmem:[%s9 + $0x38] sm:$0xff]
      %v948 = vld [vmem:[%s9 + $0x40] sm:$0xff]
      %v949 = vld [vmem:[%s9 + $0x48] sm:$0xff]
      %v950 = vld [vmem:[%s9 + $0x50] sm:$0xff]
      %v951 = vld [vmem:[%s9 + $0x58] sm:$0xff]
      %v952 = vld [vmem:[%s9 + $0x60] sm:$0xff]
      %v953 = vld [vmem:[%s9 + $0x68] sm:$0xff]
      %v954 = vld [vmem:[%s9 + $0x70] sm:$0xff]
      %v955 = vld [vmem:[%s9 + $0x78] sm:$0xff]
      %v956 = vld [vmem:[%s10] sm:$0x3]
      %v958 = vperm.slane %v956, 0
      %v959 = vperm.slane %v956, 1
      %v978 = vunpack.c.l.b16 %v940
      %v979 = vunpack.c.h.b16 %v940
      %v980 = vunpack.c.l.b16 %v941
      %v981 = vunpack.c.h.b16 %v941
      %v982 = vunpack.c.l.b16 %v942
      %v983 = vunpack.c.h.b16 %v942
      %v984 = vunpack.c.l.b16 %v943
      %v985 = vunpack.c.h.b16 %v943
      %v986 = vunpack.c.l.b16 %v944
      %v987 = vunpack.c.h.b16 %v944
      %v988 = vunpack.c.l.b16 %v945
      %v989 = vunpack.c.h.b16 %v945
      %v990 = vunpack.c.l.b16 %v946
      %v991 = vunpack.c.h.b16 %v946
      %v992 = vunpack.c.l.b16 %v947
      %v993 = vunpack.c.h.b16 %v947
      %v994 = vunpack.c.l.b16 %v948
      %v995 = vunpack.c.h.b16 %v948
      %v996 = vunpack.c.l.b16 %v949
      %v997 = vunpack.c.h.b16 %v949
      %v998 = vunpack.c.l.b16 %v950
      %v999 = vunpack.c.h.b16 %v950
      %v1000 = vunpack.c.l.b16 %v951
      %v1001 = vunpack.c.h.b16 %v951
      %v1002 = vunpack.c.l.b16 %v952
      %v1003 = vunpack.c.h.b16 %v952
      %v1004 = vunpack.c.l.b16 %v953
      %v1005 = vunpack.c.h.b16 %v953
      %v1006 = vunpack.c.l.b16 %v954
      %v1007 = vunpack.c.h.b16 %v954
      %v1008 = vunpack.c.l.b16 %v955
      %v1009 = vunpack.c.h.b16 %v955
      %v1010 = vpack.c.b16 %v980, %v978
      %v1011 = vpack.c.b16 %v981, %v979
      %v1012 = vpack.c.b16 %v984, %v982
      %v1013 = vpack.c.b16 %v985, %v983
      %v1014 = vpack.c.b16 %v988, %v986
      %v1015 = vpack.c.b16 %v989, %v987
      %v1016 = vpack.c.b16 %v992, %v990
      %v1017 = vpack.c.b16 %v993, %v991
      %v1018 = vpack.c.b16 %v996, %v994
      %v1019 = vpack.c.b16 %v997, %v995
      %v1020 = vpack.c.b16 %v1000, %v998
      %v1021 = vpack.c.b16 %v1001, %v999
      %v1022 = vpack.c.b16 %v1004, %v1002
      %v1023 = vpack.c.b16 %v1005, %v1003
      %v1024 = vpack.c.b16 %v1008, %v1006
      %v1025 = vpack.c.b16 %v1009, %v1007
      %1042 = vmatpush.bf16.msra.mxu0 %v1024
      %1043 = vmatpush.bf16.msra.mxu0 %v1022
      %1044 = vmatpush.bf16.msra.mxu0 %v1020
      %1045 = vmatpush.bf16.msra.mxu0 %v1018
      %1046 = vmatpush.bf16.msra.mxu0 %v1016
      %1047 = vmatpush.bf16.msra.mxu0 %v1014
      %1048 = vmatpush.bf16.msra.mxu0 %v1012
      %1049 = vmatpush.bf16.msra.mxu0 %v1010
      %1050 = vmatmul.bf16.gmra.mxu0 %v938
      %v1051 = vpop.f32.mrf.mxu0
      %v1052 = vadd.f32 %v958, %v1051
      %v1053 = vpop.f32.mrf.mxu0
      %v1054 = vadd.f32 %v958, %v1053
      %1055 = vmatmul.bf16.gmra.mxu0 %v939
      %v1056 = vpop.f32.mrf.mxu0
      %v1057 = vadd.f32 %v958, %v1056
      %v1058 = vpop.f32.mrf.mxu0
      %v1059 = vadd.f32 %v958, %v1058
      %1060 = vdwg.mxu0
      %1061 = vmatpush.bf16.msra.mxu0 %v1025
      %1062 = vmatpush.bf16.msra.mxu0 %v1023
      %1063 = vmatpush.bf16.msra.mxu0 %v1021
      %1064 = vmatpush.bf16.msra.mxu0 %v1019
      %1065 = vmatpush.bf16.msra.mxu0 %v1017
      %1066 = vmatpush.bf16.msra.mxu0 %v1015
      %1067 = vmatpush.bf16.msra.mxu0 %v1013
      %1068 = vmatpush.bf16.msra.mxu0 %v1011
      %1069 = vmatmul.bf16.gmra.mxu0 %v938
      %v1070 = vpop.f32.mrf.mxu0
      %v1071 = vadd.f32 %v959, %v1070
      %v1072 = vpop.f32.mrf.mxu0
      %v1073 = vadd.f32 %v959, %v1072
      %1074 = vmatmul.bf16.gmra.mxu0 %v939
      %v1075 = vpop.f32.mrf.mxu0
      %v1076 = vadd.f32 %v959, %v1075
      %v1077 = vpop.f32.mrf.mxu0
      %v1078 = vadd.f32 %v959, %v1077
      %1079 = vdwg.mxu0
      %v1080 = vmax.f32 %v1052, 0.0
      %v1081 = vmax.f32 %v1071, 0.0
      %v1082 = vmax.f32 %v1054, 0.0
      %v1083 = vmax.f32 %v1073, 0.0
      %v1084 = vmax.f32 %v1057, 0.0
      %v1085 = vmax.f32 %v1076, 0.0
      %v1086 = vmax.f32 %v1059, 0.0
      %v1087 = vmax.f32 %v1078, 0.0
      %v1088 = vpack.c.bf16 %v1082, %v1080
      %v1089 = vpack.c.bf16 %v1083, %v1081
      %v1090 = vpack.c.bf16 %v1086, %v1084
      %v1091 = vpack.c.bf16 %v1087, %v1085
      %v1092 = vld [vmem:[%s11] sm:$0xf]
      %v1093 = vld [vmem:[%s11 + $0x4] sm:$0xf]
      %v1094 = vld [vmem:[%s11 + $0x8] sm:$0xf]
      %v1095 = vld [vmem:[%s11 + $0xc] sm:$0xf]
      %v1096 = vld [vmem:[%s11 + $0x10] sm:$0xf]
      %v1097 = vld [vmem:[%s11 + $0x14] sm:$0xf]
      %v1098 = vld [vmem:[%s11 + $0x18] sm:$0xf]
      %v1099 = vld [vmem:[%s11 + $0x1c] sm:$0xf]
      %v1100 = vld [vmem:[%s11 + $0x20] sm:$0xf]
      %v1101 = vld [vmem:[%s11 + $0x24] sm:$0xf]
      %v1102 = vld [vmem:[%s11 + $0x28] sm:$0xf]
      %v1103 = vld [vmem:[%s11 + $0x2c] sm:$0xf]
      %v1104 = vld [vmem:[%s11 + $0x30] sm:$0xf]
      %v1105 = vld [vmem:[%s11 + $0x34] sm:$0xf]
      %v1106 = vld [vmem:[%s11 + $0x38] sm:$0xf]
      %v1107 = vld [vmem:[%s11 + $0x3c] sm:$0xf]
      %v1108 = vld [vmem:[%s11 + $0x40] sm:$0xf]
      %v1109 = vld [vmem:[%s11 + $0x44] sm:$0xf]
      %v1110 = vld [vmem:[%s11 + $0x48] sm:$0xf]
      %v1111 = vld [vmem:[%s11 + $0x4c] sm:$0xf]
      %v1112 = vld [vmem:[%s11 + $0x50] sm:$0xf]
      %v1113 = vld [vmem:[%s11 + $0x54] sm:$0xf]
      %v1114 = vld [vmem:[%s11 + $0x58] sm:$0xf]
      %v1115 = vld [vmem:[%s11 + $0x5c] sm:$0xf]
      %v1116 = vld [vmem:[%s11 + $0x60] sm:$0xf]
      %v1117 = vld [vmem:[%s11 + $0x64] sm:$0xf]
      %v1118 = vld [vmem:[%s11 + $0x68] sm:$0xf]
      %v1119 = vld [vmem:[%s11 + $0x6c] sm:$0xf]
      %v1120 = vld [vmem:[%s11 + $0x70] sm:$0xf]
      %v1121 = vld [vmem:[%s11 + $0x74] sm:$0xf]
      %v1122 = vld [vmem:[%s11 + $0x78] sm:$0xf]
      %v1123 = vld [vmem:[%s11 + $0x7c] sm:$0xf]
      %v1124 = vld [vmem:[%s12] sm:$0x1]
      %v1126 = vperm.slane %v1124, 0
      %v1160 = vunpack.c.l.b16 %v1092
      %v1161 = vunpack.c.l.b16 %v1093
      %v1162 = vunpack.c.l.b16 %v1094
      %v1163 = vunpack.c.l.b16 %v1095
      %v1164 = vunpack.c.l.b16 %v1096
      %v1165 = vunpack.c.l.b16 %v1097
      %v1166 = vunpack.c.l.b16 %v1098
      %v1167 = vunpack.c.l.b16 %v1099
      %v1168 = vunpack.c.l.b16 %v1100
      %v1169 = vunpack.c.l.b16 %v1101
      %v1170 = vunpack.c.l.b16 %v1102
      %v1171 = vunpack.c.l.b16 %v1103
      %v1172 = vunpack.c.l.b16 %v1104
      %v1173 = vunpack.c.l.b16 %v1105
      %v1174 = vunpack.c.l.b16 %v1106
      %v1175 = vunpack.c.l.b16 %v1107
      %v1176 = vunpack.c.l.b16 %v1108
      %v1177 = vunpack.c.l.b16 %v1109
      %v1178 = vunpack.c.l.b16 %v1110
      %v1179 = vunpack.c.l.b16 %v1111
      %v1180 = vunpack.c.l.b16 %v1112
      %v1181 = vunpack.c.l.b16 %v1113
      %v1182 = vunpack.c.l.b16 %v1114
      %v1183 = vunpack.c.l.b16 %v1115
      %v1184 = vunpack.c.l.b16 %v1116
      %v1185 = vunpack.c.l.b16 %v1117
      %v1186 = vunpack.c.l.b16 %v1118
      %v1187 = vunpack.c.l.b16 %v1119
      %v1188 = vunpack.c.l.b16 %v1120
      %v1189 = vunpack.c.l.b16 %v1121
      %v1190 = vunpack.c.l.b16 %v1122
      %v1191 = vunpack.c.l.b16 %v1123
      %v1192 = vpack.c.b16 %v1161, %v1160
      %v1193 = vpack.c.b16 %v1163, %v1162
      %v1194 = vpack.c.b16 %v1165, %v1164
      %v1195 = vpack.c.b16 %v1167, %v1166
      %v1196 = vpack.c.b16 %v1169, %v1168
      %v1197 = vpack.c.b16 %v1171, %v1170
      %v1198 = vpack.c.b16 %v1173, %v1172
      %v1199 = vpack.c.b16 %v1175, %v1174
      %v1200 = vpack.c.b16 %v1177, %v1176
      %v1201 = vpack.c.b16 %v1179, %v1178
      %v1202 = vpack.c.b16 %v1181, %v1180
      %v1203 = vpack.c.b16 %v1183, %v1182
      %v1204 = vpack.c.b16 %v1185, %v1184
      %v1205 = vpack.c.b16 %v1187, %v1186
      %v1206 = vpack.c.b16 %v1189, %v1188
      %v1207 = vpack.c.b16 %v1191, %v1190
      %1224 = vmatpush.bf16.msra.mxu0 %v1199
      %1225 = vmatpush.bf16.msra.mxu0 %v1198
      %1226 = vmatpush.bf16.msra.mxu0 %v1197
      %1227 = vmatpush.bf16.msra.mxu0 %v1196
      %1228 = vmatpush.bf16.msra.mxu0 %v1195
      %1229 = vmatpush.bf16.msra.mxu0 %v1194
      %1230 = vmatpush.bf16.msra.mxu0 %v1193
      %1231 = vmatpush.bf16.msra.mxu0 %v1192
      %1232 = vmatmul.bf16.gmra.mxu0 %v1088
      %v1233 = vpop.f32.mrf.mxu0
      %v1234 = vadd.f32 %v1126, %v1233
      %v1235 = vpop.f32.mrf.mxu0
      %v1236 = vadd.f32 %v1126, %v1235
      %1237 = vmatmul.bf16.gmra.mxu0 %v1090
      %v1238 = vpop.f32.mrf.mxu0
      %v1239 = vadd.f32 %v1126, %v1238
      %v1240 = vpop.f32.mrf.mxu0
      %v1241 = vadd.f32 %v1126, %v1240
      %1242 = vdwg.mxu0
      %1243 = vmatpush.bf16.msra.mxu0 %v1207
      %1244 = vmatpush.bf16.msra.mxu0 %v1206
      %1245 = vmatpush.bf16.msra.mxu0 %v1205
      %1246 = vmatpush.bf16.msra.mxu0 %v1204
      %1247 = vmatpush.bf16.msra.mxu0 %v1203
      %1248 = vmatpush.bf16.msra.mxu0 %v1202
      %1249 = vmatpush.bf16.msra.mxu0 %v1201
      %1250 = vmatpush.bf16.msra.mxu0 %v1200
      %1251 = vmatmul.bf16.gmra.mxu0 %v1089
      %v1252 = vpop.f32.mrf.mxu0
      %v1253 = vadd.f32 %v1234, %v1252
      %v1254 = vpop.f32.mrf.mxu0
      %v1255 = vadd.f32 %v1236, %v1254
      %1256 = vmatmul.bf16.gmra.mxu0 %v1091
      %v1257 = vpop.f32.mrf.mxu0
      %v1258 = vadd.f32 %v1239, %v1257
      %v1259 = vpop.f32.mrf.mxu0
      %v1260 = vadd.f32 %v1241, %v1259
      %1261 = vdwg.mxu0
      %v1262 = vmul.f32 %v1253, 0.5
      %v1263 = vmul.f32 %v1255, 0.5
      %v1264 = vmul.f32 %v1258, 0.5
      %v1265 = vmul.f32 %v1260, 0.5
      %v1266 = vtanh.pop %v1262
      %v1267 = vtanh.pop %v1263
      %v1268 = vtanh.pop %v1264
      %v1269 = vtanh.pop %v1265
      %v1270 = vmul.f32 %v1266, 0.5
      %v1271 = vmul.f32 %v1267, 0.5
      %v1272 = vmul.f32 %v1268, 0.5
      %v1273 = vmul.f32 %v1269, 0.5
      %v1274 = vadd.f32 %v1270, 0.5
      %v1275 = vadd.f32 %v1271, 0.5
      %v1276 = vadd.f32 %v1272, 0.5
      %v1277 = vadd.f32 %v1273, 0.5
      %1278 = vst [vmem:[%s442] sm:$0xff] %v1274
      %1279 = vst [vmem:[%s442 + $0x8] sm:$0xff] %v1275
      %1280 = vst [vmem:[%s442 + $0x10] sm:$0xff] %v1276
      %1281 = vst [vmem:[%s442 + $0x18] sm:$0xff] %v1277
      %s1282 = smul.u32 4, %s24
      %p1283 = scmp.lt.s32.totalorder %s1282, 7
      %s1284 = scalar_select %p1283, %s1282, 7
      %s1285 = smul.addr %s1284, 8
      %s1286 = scalar_lea.vmem %s13, %s1285
      // Predicated region
      $region73: #{autoencoder_forward.1} parent=71 // pred_check
        %p1287 = pneg %p320
      $region74: #{autoencoder_forward.1} parent=71 // pred_check_branch
        %1289 = sbr.rel (%p1287) target = $region76
      $region75: #{autoencoder_forward.1} parent=71 // pred_region
        %s1290 = smul.u32 4, %s24
      $region76: #{autoencoder_forward.1} parent=71 // pred_fallthru
        _
    $region72: #{autoencoder_forward.1} parent=5 // pred_fallthru
      _
    %p1291 = scmp.le.s32.totalorder 2, %s19
    // Predicated region
    $region77: #{autoencoder_forward.1} parent=5 // pred_check
      %p1292 = pneg %p1291
    $region78: #{autoencoder_forward.1} parent=5 // pred_check_branch
      %1294 = sbr.rel (%p1292) target = $region80
    $region79: #{autoencoder_forward.1} parent=5 // pred_region
      %s1295 = ssub.s32 %s19, 2
      // Predicated region
      $region81: #{autoencoder_forward.1} parent=79 // pred_check
        %p1296 = pneg %p326
      $region82: #{autoencoder_forward.1} parent=79 // pred_check_branch
        %1298 = sbr.rel (%p1296) target = $region84
      $region83: #{autoencoder_forward.1} parent=79 // pred_region
        %s1299 = smul.u32 4, %s25
        %p1300 = scmp.lt.s32.totalorder %s1299, 7
        %s1301 = scalar_select %p1300, %s1299, 7
        %s1302 = smul.addr %s1301, 8
        %s1303 = scalar_lea.vmem %s13, %s1302
      $region84: #{autoencoder_forward.1} parent=79 // pred_fallthru
        _
    $region80: #{autoencoder_forward.1} parent=5 // pred_fallthru
      _
  $region6: #{autoencoder_forward.1} parent=0 // loop_footer
    %s23 = sadd.s32 1, %s19
  $region7: #{autoencoder_forward.1} parent=0 // loop_footer_branch
    %18 = sbr.rel target = $region3
  $region8: #{autoencoder_forward.1} parent=0 // loop_exit
    _

</llo_original>
